<compile_context>
chip_gen: v7x
topology: tpu7x:2x2x1
jax: 0.10.0
libtpu: 0.0.40
codegen_flags: <defaults>
</compile_context>

<pallas_src>
import jax
import jax.numpy as jnp
from jax.experimental import pallas as pl
from jax.experimental.pallas import tpu as pltpu

_LANE = 128  # lane width; bm is always a multiple of this


def _log_softmax_cols(logits):
    """Numerically stable log_softmax over axis 0 (classes); batch on lanes."""
    m = jnp.max(logits, axis=0, keepdims=True)
    s = logits - m
    return s - jnp.log(jnp.sum(jnp.exp(s), axis=0, keepdims=True))


def mlp3_kernel(x_ref, w1_ref, b1_ref, w2_ref, b2_ref, w3_ref, b3_ref, o_ref):
    # x_ref: (bm, D_in); w_i: torch-native (out, in); b_i: (out, 1); o: (D_out, bm)
    x = x_ref[...]
    w1 = w1_ref[...]
    if x.dtype != w1.dtype:          # trace-time branch; mirrors x.float()
        x = x.astype(w1.dtype)
    # W @ x.T contraction (same pattern as jnp.dot(q, k.T) in attention
    # kernels) keeps the batch on the lane axis for everything downstream.
    z1 = jnp.dot(w1, x.T, preferred_element_type=jnp.float32) + b1_ref[...]       # (H1, bm)
    h1 = jax.nn.sigmoid(z1)
    z2 = jnp.dot(w2_ref[...], h1, preferred_element_type=jnp.float32) + b2_ref[...]  # (H2, bm)
    h2 = jax.nn.sigmoid(z2)
    logits = jnp.dot(w3_ref[...], h2, preferred_element_type=jnp.float32) + b3_ref[...]  # (D_out, bm)
    o_ref[...] = _log_softmax_cols(logits)


def linear1_kernel(x_ref, w_ref, b_ref, o_ref):
    # H1 == 1 branch of the module: single Linear(D_in, 2) + log_softmax.
    x = x_ref[...]
    w = w_ref[...]
    if x.dtype != w.dtype:
        x = x.astype(w.dtype)
    logits = jnp.dot(w, x.T, preferred_element_type=jnp.float32) + b_ref[...]      # (D_out, bm)
    o_ref[...] = _log_softmax_cols(logits)


def _vmem_capacity_bytes():
    try:
        return int(pltpu.get_tpu_info().vmem_capacity_bytes)
    except Exception:
        return 64 << 20   # conservative fallback = v7x physical VMEM


def _plan_grid(B, d_in, hidden_dims, d_out, x_itemsize, *, max_bm=32768):
    """Pick (bm, n_steps, padded_B).

    bm targets ~1/3 of this generation's physical VMEM for the per-step
    working set (double-buffered x + out tiles plus f32 intermediates), is a
    multiple of 128 so the (D_out, bm) output block is lane-dense, and the
    step count is kept even (and >= 2 when B allows) so v7x's two TensorCores
    split the "parallel" batch axis evenly.
    """
    row_bytes = (
        2 * d_in * x_itemsize                        # double-buffered x tile
        + 2 * d_out * 4                              # double-buffered out tile
        + 4 * (d_in + sum(hidden_dims) + 4 * d_out)  # f32 intermediates / spill slack
    )
    budget = _vmem_capacity_bytes() // 3
    cap = min(max_bm, max(_LANE, budget // max(row_bytes, 1)))
    cap -= cap % _LANE

    n_steps = -(-B // cap)
    if n_steps == 1 and B > _LANE:
        n_steps = 2                                   # give both v7x TCs a step
    if n_steps > 1 and n_steps % 2:
        n_steps += 1                                  # even split across 2 TCs
    bm = -(-(-(-B // n_steps)) // _LANE) * _LANE      # round per-step rows up to 128
    return bm, n_steps, n_steps * bm


def two_layer_net_forward(x, layers, *, bm=None, bf16_matmul=True):
    """Fused TwoLayerNet.forward.

    layers = [(w, b)] for the H1 == 1 branch, or [(w1,b1),(w2,b2),(w3,b3)] for
    the sigmoid/sigmoid/log_softmax branch.  Weights are torch-native
    (out, in) (i.e. module.linearN.weight as-is); biases are (out,) or (out,1).
    Returns (B, 2) float32 log-probabilities, matching TwoLayerNet.forward.

    bf16_matmul: when x is bf16, run the first-layer matmul MXU-native in bf16
    (w1 cast once here) instead of mirroring x.float(); set False for exact
    x.float() semantics.
    """
    assert len(layers) in (1, 3)
    B, d_in = x.shape

    ws, bs = [], []
    for w, b in layers:
        w = jnp.asarray(w).astype(jnp.float32)
        ws.append(w)
        bs.append(jnp.asarray(b).reshape(w.shape[0], 1).astype(jnp.float32))
    d_out = ws[-1].shape[0]
    hidden = [w.shape[0] for w in ws[:-1]]

    if bf16_matmul and x.dtype == jnp.bfloat16:
        ws[0] = ws[0].astype(jnp.bfloat16)   # bf16-native MXU path for layer 1

    if bm is None:
        bm, n_steps, padded_B = _plan_grid(B, d_in, hidden, d_out, x.dtype.itemsize)
    else:
        assert bm % _LANE == 0, "bm must be a multiple of 128"
        n_steps = -(-B // bm)
        padded_B = n_steps * bm

    if padded_B != B:
        # Rows are independent: padded zero rows produce garbage log-probs that
        # are sliced off below.
        x = jnp.pad(x, ((0, padded_B - B), (0, 0)))

    params = []
    for w, b in zip(ws, bs):
        params += [w, b]
    kernel = mlp3_kernel if len(layers) == 3 else linear1_kernel

    # Tiny weights/biases stay resident every grid step (constant index map).
    # TODO(synk): pipeline_mode=pl.Buffered(1) on these specs would halve their
    # VMEM footprint when D_in (and hence w1) is very large.
    param_specs = [pl.BlockSpec(p.shape, lambda i: (0, 0)) for p in params]

    # Scoped-VMEM limit well above the planned working set (planner targets
    # ~capacity/3) but safely below physical (64 MiB v7x, 128 MiB v5e/v6e).
    vmem_limit = (_vmem_capacity_bytes() * 3) // 4

    # TODO(synk): for extremely large D_in add a trailing "arbitrary"
    # K-reduction grid axis with an f32 VMEM accumulator instead of one giant
    # (bm, D_in) x tile, sizing tk from the per-chip VMEM query.
    out_t = pl.pallas_call(
        kernel,
        out_shape=jax.ShapeDtypeStruct((d_out, padded_B), jnp.float32),
        grid_spec=pltpu.PrefetchScalarGridSpec(
            num_scalar_prefetch=0,
            grid=(n_steps,),
            in_specs=[pl.BlockSpec((bm, d_in), lambda i: (i, 0))] + param_specs,
            out_specs=pl.BlockSpec((d_out, bm), lambda i: (0, i)),
        ),
        compiler_params=pltpu.CompilerParams(
            dimension_semantics=("parallel",),
            vmem_limit_bytes=vmem_limit,
        ),
    )(x, *params)

    # (D_out, padded_B) -> (B, D_out); transposing the tiny logits slab here
    # keeps every in-kernel store lane-dense.
    return out_t.T[:B]


if __name__ == "__main__":
    key = jax.random.PRNGKey(0)
    ks = jax.random.split(key, 10)

    # Small shapes consistent with TwoLayerNet(D_in, H1, H2) -> D_out = 2
    B, D_in, H1, H2, D_out = 64, 32, 16, 8, 2
    x = jax.random.normal(ks[0], (B, D_in), dtype=jnp.float32)

    def xavier_normal(k, fan_out, fan_in):           # torch-native (out, in)
        std = jnp.sqrt(2.0 / (fan_in + fan_out))
        return (std * jax.random.normal(k, (fan_out, fan_in))).astype(jnp.float32)

    def linear_bias(k, fan_in, fan_out):
        bound = 1.0 / jnp.sqrt(jnp.float32(fan_in))
        return jax.random.uniform(k, (fan_out,), minval=-bound, maxval=bound,
                                  dtype=jnp.float32)

    # --- 3-layer branch (H1 > 1): sigmoid -> sigmoid -> log_softmax ---
    w1, b1 = xavier_normal(ks[1], H1, D_in), linear_bias(ks[2], D_in, H1)
    w2, b2 = xavier_normal(ks[3], H2, H1),  linear_bias(ks[4], H1, H2)
    w3, b3 = xavier_normal(ks[5], D_out, H2), linear_bias(ks[6], H2, D_out)

    out3 = two_layer_net_forward(x, [(w1, b1), (w2, b2), (w3, b3)])
    jax.block_until_ready(out3)

    h1_ref = jax.nn.sigmoid(x @ w1.T + b1)
    h2_ref = jax.nn.sigmoid(h1_ref @ w2.T + b2)
    ref3 = jax.nn.log_softmax(h2_ref @ w3.T + b3, axis=-1)
    assert out3.shape == (B, D_out)
    assert jnp.allclose(out3, ref3, atol=1e-4, rtol=1e-4)

    # --- H1 == 1 branch: single Linear(D_in, 2) + log_softmax ---
    ws1, bs1 = xavier_normal(ks[7], D_out, D_in), linear_bias(ks[8], D_in, D_out)
    out1 = two_layer_net_forward(x, [(ws1, bs1)])
    jax.block_until_ready(out1)
    ref1 = jax.nn.log_softmax(x @ ws1.T + bs1, axis=-1)
    assert out1.shape == (B, D_out)
    assert jnp.allclose(out1, ref1, atol=1e-4, rtol=1e-4)

    # --- bf16 input exercises the MXU-native first-layer path ---
    x_bf16 = x.astype(jnp.bfloat16)
    out_bf = two_layer_net_forward(x_bf16, [(w1, b1), (w2, b2), (w3, b3)])
    jax.block_until_ready(out_bf)
    xf = x_bf16.astype(jnp.float32)
    w1_bf = w1.astype(jnp.bfloat16).astype(jnp.float32)
    h1b = jax.nn.sigmoid(xf @ w1_bf.T + b1)
    h2b = jax.nn.sigmoid(h1b @ w2.T + b2)
    refb = jax.nn.log_softmax(h2b @ w3.T + b3, axis=-1)
    assert out_bf.shape == (B, D_out)
    assert jnp.allclose(out_bf, refb, atol=5e-2, rtol=5e-2)

    print("KERNEL_OK")
</pallas_src>

<mosaic_0001>
module attributes {stable_mosaic.version = 11 : i64} {
  func.func @mlp3_kernel(%arg0: i32, %arg1: memref<128x32xf32, #tpu.memory_space<vmem>>, %arg2: memref<16x32xf32, #tpu.memory_space<vmem>>, %arg3: memref<16x1xf32, #tpu.memory_space<vmem>>, %arg4: memref<8x16xf32, #tpu.memory_space<vmem>>, %arg5: memref<8x1xf32, #tpu.memory_space<vmem>>, %arg6: memref<2x8xf32, #tpu.memory_space<vmem>>, %arg7: memref<2x1xf32, #tpu.memory_space<vmem>>, %arg8: memref<2x128xf32, #tpu.memory_space<vmem>>) attributes {dimension_semantics = [#tpu.dimension_semantics<parallel>], iteration_bounds = array<i64: 1>, scalar_prefetch = 0 : i64, scratch_operands = 0 : i64, tpu.core_type = #tpu.core_type<tc>, window_params = [{transform_indices = @transform_0, window_bounds = array<i64: 128, 32>}, {pipeline_mode = #tpu.pipeline_mode<synchronous>, transform_indices = @transform_1, window_bounds = array<i64: 16, 32>}, {pipeline_mode = #tpu.pipeline_mode<synchronous>, transform_indices = @transform_2, window_bounds = array<i64: 16, 1>}, {pipeline_mode = #tpu.pipeline_mode<synchronous>, transform_indices = @transform_3, window_bounds = array<i64: 8, 16>}, {pipeline_mode = #tpu.pipeline_mode<synchronous>, transform_indices = @transform_4, window_bounds = array<i64: 8, 1>}, {pipeline_mode = #tpu.pipeline_mode<synchronous>, transform_indices = @transform_5, window_bounds = array<i64: 2, 8>}, {pipeline_mode = #tpu.pipeline_mode<synchronous>, transform_indices = @transform_6, window_bounds = array<i64: 2, 1>}, {transform_indices = @transform_7, window_bounds = array<i64: 2, 128>}]} {
    %c0 = arith.constant 0 : index
    %c0_0 = arith.constant 0 : index
    %0 = vector.load %arg1[%c0, %c0_0] : memref<128x32xf32, #tpu.memory_space<vmem>>, vector<128x32xf32>
    %c0_1 = arith.constant 0 : index
    %c0_2 = arith.constant 0 : index
    %1 = vector.load %arg2[%c0_1, %c0_2] : memref<16x32xf32, #tpu.memory_space<vmem>>, vector<16x32xf32>
    %2 = tpu.transpose %0, [1, 0] : vector<128x32xf32> -> vector<32x128xf32>
    %cst = arith.constant dense<0.000000e+00> : vector<16x128xf32>
    %3 = tpu.matmul %1, %2, %cst {dimension_numbers = #tpu.dot_dimension_numbers<[1], [0], [0], [1], [0, 0, 1, 1], [], []>} : vector<16x32xf32>, vector<32x128xf32>, vector<16x128xf32> -> vector<16x128xf32>
    %c0_3 = arith.constant 0 : index
    %c0_4 = arith.constant 0 : index
    %4 = vector.load %arg3[%c0_3, %c0_4] : memref<16x1xf32, #tpu.memory_space<vmem>>, vector<16x1xf32>
    %5 = vector.broadcast %4 : vector<16x1xf32> to vector<16x128xf32>
    %6 = arith.addf %3, %5 : vector<16x128xf32>
    %7 = arith.negf %6 : vector<16x128xf32>
    %8 = math.exp %7 : vector<16x128xf32>
    %cst_5 = arith.constant 1.000000e+00 : f32
    %9 = vector.broadcast %cst_5 : f32 to vector<16x128xf32>
    %10 = arith.addf %9, %8 : vector<16x128xf32>
    %11 = arith.divf %9, %10 : vector<16x128xf32>
    %c0_6 = arith.constant 0 : index
    %c0_7 = arith.constant 0 : index
    %12 = vector.load %arg4[%c0_6, %c0_7] : memref<8x16xf32, #tpu.memory_space<vmem>>, vector<8x16xf32>
    %cst_8 = arith.constant dense<0.000000e+00> : vector<8x128xf32>
    %13 = tpu.matmul %12, %11, %cst_8 {dimension_numbers = #tpu.dot_dimension_numbers<[1], [0], [0], [1], [0, 0, 1, 1], [], []>} : vector<8x16xf32>, vector<16x128xf32>, vector<8x128xf32> -> vector<8x128xf32>
    %c0_9 = arith.constant 0 : index
    %c0_10 = arith.constant 0 : index
    %14 = vector.load %arg5[%c0_9, %c0_10] : memref<8x1xf32, #tpu.memory_space<vmem>>, vector<8x1xf32>
    %15 = vector.broadcast %14 : vector<8x1xf32> to vector<8x128xf32>
    %16 = arith.addf %13, %15 : vector<8x128xf32>
    %17 = arith.negf %16 : vector<8x128xf32>
    %18 = math.exp %17 : vector<8x128xf32>
    %cst_11 = arith.constant 1.000000e+00 : f32
    %19 = vector.broadcast %cst_11 : f32 to vector<8x128xf32>
    %20 = arith.addf %19, %18 : vector<8x128xf32>
    %21 = arith.divf %19, %20 : vector<8x128xf32>
    %c0_12 = arith.constant 0 : index
    %c0_13 = arith.constant 0 : index
    %22 = vector.load %arg6[%c0_12, %c0_13] : memref<2x8xf32, #tpu.memory_space<vmem>>, vector<2x8xf32>
    %cst_14 = arith.constant dense<0.000000e+00> : vector<2x128xf32>
    %23 = tpu.matmul %22, %21, %cst_14 {dimension_numbers = #tpu.dot_dimension_numbers<[1], [0], [0], [1], [0, 0, 1, 1], [], []>} : vector<2x8xf32>, vector<8x128xf32>, vector<2x128xf32> -> vector<2x128xf32>
    %c0_15 = arith.constant 0 : index
    %c0_16 = arith.constant 0 : index
    %24 = vector.load %arg7[%c0_15, %c0_16] : memref<2x1xf32, #tpu.memory_space<vmem>>, vector<2x1xf32>
    %25 = vector.broadcast %24 : vector<2x1xf32> to vector<2x128xf32>
    %26 = arith.addf %23, %25 : vector<2x128xf32>
    %cst_17 = arith.constant dense<0xFF800000> : vector<128xf32>
    %27 = vector.multi_reduction <maximumf>, %26, %cst_17 [0] : vector<2x128xf32> to vector<128xf32>
    %28 = vector.shape_cast %27 : vector<128xf32> to vector<1x128xf32>
    %29 = vector.broadcast %28 : vector<1x128xf32> to vector<2x128xf32>
    %30 = arith.subf %26, %29 : vector<2x128xf32>
    %31 = math.exp %30 : vector<2x128xf32>
    %cst_18 = arith.constant dense<0.000000e+00> : vector<128xf32>
    %32 = vector.multi_reduction <add>, %31, %cst_18 [0] : vector<2x128xf32> to vector<128xf32>
    %33 = vector.shape_cast %32 : vector<128xf32> to vector<1x128xf32>
    %34 = math.log %33 : vector<1x128xf32>
    %35 = vector.broadcast %34 : vector<1x128xf32> to vector<2x128xf32>
    %36 = arith.subf %30, %35 : vector<2x128xf32>
    %c0_19 = arith.constant 0 : index
    %c0_20 = arith.constant 0 : index
    %37 = vector.load %arg8[%c0_19, %c0_20] : memref<2x128xf32, #tpu.memory_space<vmem>>, vector<2x128xf32>
    tpu.vector_store %arg8[%c0_19, %c0_20], %36 {strides = array<i32>} : memref<2x128xf32, #tpu.memory_space<vmem>>, vector<2x128xf32>,
    return
  }
  func.func @transform_0(%arg0: i32) -> (i32, i32) {
    %c0_i32 = arith.constant 0 : i32
    %c0_i32_0 = arith.constant 0 : i32
    return %arg0, %c0_i32 : i32, i32
  }
  func.func @transform_1(%arg0: i32) -> (i32, i32) {
    %c0_i32 = arith.constant 0 : i32
    %c0_i32_0 = arith.constant 0 : i32
    %c0_i32_1 = arith.constant 0 : i32
    return %c0_i32, %c0_i32_0 : i32, i32
  }
  func.func @transform_2(%arg0: i32) -> (i32, i32) {
    %c0_i32 = arith.constant 0 : i32
    %c0_i32_0 = arith.constant 0 : i32
    %c0_i32_1 = arith.constant 0 : i32
    return %c0_i32, %c0_i32_0 : i32, i32
  }
  func.func @transform_3(%arg0: i32) -> (i32, i32) {
    %c0_i32 = arith.constant 0 : i32
    %c0_i32_0 = arith.constant 0 : i32
    %c0_i32_1 = arith.constant 0 : i32
    return %c0_i32, %c0_i32_0 : i32, i32
  }
  func.func @transform_4(%arg0: i32) -> (i32, i32) {
    %c0_i32 = arith.constant 0 : i32
    %c0_i32_0 = arith.constant 0 : i32
    %c0_i32_1 = arith.constant 0 : i32
    return %c0_i32, %c0_i32_0 : i32, i32
  }
  func.func @transform_5(%arg0: i32) -> (i32, i32) {
    %c0_i32 = arith.constant 0 : i32
    %c0_i32_0 = arith.constant 0 : i32
    %c0_i32_1 = arith.constant 0 : i32
    return %c0_i32, %c0_i32_0 : i32, i32
  }
  func.func @transform_6(%arg0: i32) -> (i32, i32) {
    %c0_i32 = arith.constant 0 : i32
    %c0_i32_0 = arith.constant 0 : i32
    %c0_i32_1 = arith.constant 0 : i32
    return %c0_i32, %c0_i32_0 : i32, i32
  }
  func.func @transform_7(%arg0: i32) -> (i32, i32) {
    %c0_i32 = arith.constant 0 : i32
    %c0_i32_0 = arith.constant 0 : i32
    return %c0_i32, %arg0 : i32, i32
  }
}

</mosaic_0001>

<llo_original>
// kernel: tpu_custom_call.1
$region0: #{tpu_custom_call.1}
  #allocation0 [shape = 'u32[]', space=smem, size = 0x4, offset = 0x4, fixed_abs, tag = 'smem constant byte address 0x4 - core index']
  #allocation1 [shape = 'u32[144,128]{1,0:T(1,128)}', space=vmem, size = 0x12000, scoped, tag = 'internal scratch']
  %s0 = inlined_call_operand.vmem [shape: f32[128,32], index: 0, kind: input, shape index: {}]
  %s1 = inlined_call_operand.vmem [shape: f32[16,32], index: 1, kind: input, shape index: {}]
  %s2 = inlined_call_operand.vmem [shape: f32[16,1], index: 2, kind: input, shape index: {}]
  %s3 = inlined_call_operand.vmem [shape: f32[8,16], index: 3, kind: input, shape index: {}]
  %s4 = inlined_call_operand.vmem [shape: f32[8,1], index: 4, kind: input, shape index: {}]
  %s5 = inlined_call_operand.vmem [shape: f32[2,8], index: 5, kind: input, shape index: {}]
  %s6 = inlined_call_operand.vmem [shape: f32[2,1], index: 6, kind: input, shape index: {}]
  %s7 = inlined_call_operand.hbm [shape: f32[2,128], index: 7, kind: output, shape index: {}]
  %s8 = sld [smem:[#allocation0]]
  $region38: #{tpu_custom_call.1} parent=0
    _
  %s10 = ssub.s32 1, %s8
  %s11 = scalar_select 0, %s10, %s8
  $region1: #{tpu_custom_call.1} parent=0
    #allocation2 [shape = 'u8[1024]{0}', space=vmem, size = 0x400, scoped, tag = 'output window, operand 0, single buffered']
    #allocation3 [shape = 's32[1]{0}', space=sflag, size = 0x4, scoped, tag = 'scoped memory for tpu_custom_call.1']
    %12 = vsyncpa [#allocation3], 0
    // Predicated region
    $region2: #{tpu_custom_call.1} parent=1 // pred_check
      _
    $region3: #{tpu_custom_call.1} parent=1 // pred_check_branch
      %14 = sbr.rel (0) target = $region5
    $region4: #{tpu_custom_call.1} parent=1 // pred_region
      _
    $region5: #{tpu_custom_call.1} parent=1 // pred_fallthru
      _
    // Predicated region
    $region6: #{tpu_custom_call.1} parent=1 // pred_check
      _
    $region7: #{tpu_custom_call.1} parent=1 // pred_check_branch
      %16 = sbr.rel (0) target = $region9
    $region8: #{tpu_custom_call.1} parent=1 // pred_region
      _
    $region9: #{tpu_custom_call.1} parent=1 // pred_fallthru
      _
    // Predicated region
    $region10: #{tpu_custom_call.1} parent=1 // pred_check
      _
    $region11: #{tpu_custom_call.1} parent=1 // pred_check_branch
      %18 = sbr.rel (0) target = $region13
    $region12: #{tpu_custom_call.1} parent=1 // pred_region
      _
    $region13: #{tpu_custom_call.1} parent=1 // pred_fallthru
      _
    // Predicated region
    $region14: #{tpu_custom_call.1} parent=1 // pred_check
      _
    $region15: #{tpu_custom_call.1} parent=1 // pred_check_branch
      %20 = sbr.rel (0) target = $region17
    $region16: #{tpu_custom_call.1} parent=1 // pred_region
      _
    $region17: #{tpu_custom_call.1} parent=1 // pred_fallthru
      _
    // Predicated region
    $region18: #{tpu_custom_call.1} parent=1 // pred_check
      _
    $region19: #{tpu_custom_call.1} parent=1 // pred_check_branch
      %22 = sbr.rel (0) target = $region21
    $region20: #{tpu_custom_call.1} parent=1 // pred_region
      _
    $region21: #{tpu_custom_call.1} parent=1 // pred_fallthru
      _
    // Predicated region
    $region22: #{tpu_custom_call.1} parent=1 // pred_check
      _
    $region23: #{tpu_custom_call.1} parent=1 // pred_check_branch
      %24 = sbr.rel (0) target = $region25
    $region24: #{tpu_custom_call.1} parent=1 // pred_region
      _
    $region25: #{tpu_custom_call.1} parent=1 // pred_fallthru
      _
    // Predicated region
    $region26: #{tpu_custom_call.1} parent=1 // pred_check
      _
    $region27: #{tpu_custom_call.1} parent=1 // pred_check_branch
      %26 = sbr.rel (0) target = $region29
    $region28: #{tpu_custom_call.1} parent=1 // pred_region
      _
    $region29: #{tpu_custom_call.1} parent=1 // pred_fallthru
      _
    %v27 = vld [vmem:[%s0] sm:$0xff]
    %v28 = vld [vmem:[%s0 + $0x8] sm:$0xff]
    %v29 = vld [vmem:[%s0 + $0x10] sm:$0xff]
    %v30 = vld [vmem:[%s0 + $0x18] sm:$0xff]
    %v31 = vld [vmem:[%s0 + $0x20] sm:$0xff]
    %v32 = vld [vmem:[%s0 + $0x28] sm:$0xff]
    %v33 = vld [vmem:[%s0 + $0x30] sm:$0xff]
    %v34 = vld [vmem:[%s0 + $0x38] sm:$0xff]
    %v35 = vld [vmem:[%s0 + $0x40] sm:$0xff]
    %v36 = vld [vmem:[%s0 + $0x48] sm:$0xff]
    %v37 = vld [vmem:[%s0 + $0x50] sm:$0xff]
    %v38 = vld [vmem:[%s0 + $0x58] sm:$0xff]
    %v39 = vld [vmem:[%s0 + $0x60] sm:$0xff]
    %v40 = vld [vmem:[%s0 + $0x68] sm:$0xff]
    %v41 = vld [vmem:[%s0 + $0x70] sm:$0xff]
    %v42 = vld [vmem:[%s0 + $0x78] sm:$0xff]
    %v43 = vld [vmem:[%s1] sm:$0xff]
    %v44 = vld [vmem:[%s1 + $0x8] sm:$0xff]
    %v45 = vld [vmem:[%s2] sm:$0xff]
    %v46 = vld [vmem:[%s2 + $0x8] sm:$0xff]
    %48 = vset.pattern.permute.xlu0 0
    %49 = vperm.xlu0 %48, %v45
    %v50 = vpop.permute.xlu0 %49
    %53 = vset.pattern.permute.xlu0 0
    %54 = vperm.xlu0 %53, %v46
    %v55 = vpop.permute.xlu0 %54
    %vm57 = vcmask 261120
    %v59 = vsel %vm57, %v43, 0
    %v62 = vsel %vm57, %v44, 0
    %v65 = vsel %vm57, %v27, 0
    %v68 = vsel %vm57, %v28, 0
    %v71 = vsel %vm57, %v29, 0
    %v74 = vsel %vm57, %v30, 0
    %v77 = vsel %vm57, %v31, 0
    %v80 = vsel %vm57, %v32, 0
    %v83 = vsel %vm57, %v33, 0
    %v86 = vsel %vm57, %v34, 0
    %v89 = vsel %vm57, %v35, 0
    %v92 = vsel %vm57, %v36, 0
    %v95 = vsel %vm57, %v37, 0
    %v98 = vsel %vm57, %v38, 0
    %v101 = vsel %vm57, %v39, 0
    %v104 = vsel %vm57, %v40, 0
    %v107 = vsel %vm57, %v41, 0
    %v110 = vsel %vm57, %v42, 0
    %112 = vmatprep.subr.mxu0 0.0
    %113 = vmatpush1.xpose.msra.mxu0 %v65
    %114 = vmatprep.subr.mxu0 0.0
    %115 = vmatpush1.xpose.msra.mxu0 %v68
    %116 = vmatprep.subr.mxu0 0.0
    %117 = vmatpush1.xpose.msra.mxu0 %v71
    %118 = vmatprep.subr.mxu0 0.0
    %119 = vmatpush1.xpose.msra.mxu0 %v74
    %120 = vmatprep.subr.mxu0 0.0
    %121 = vmatpush1.xpose.msra.mxu0 %v77
    %122 = vmatprep.subr.mxu0 0.0
    %123 = vmatpush1.xpose.msra.mxu0 %v80
    %124 = vmatprep.subr.mxu0 0.0
    %125 = vmatpush1.xpose.msra.mxu0 %v83
    %126 = vmatprep.subr.mxu0 0.0
    %127 = vmatpush1.xpose.msra.mxu0 %v86
    %128 = vmatprep.subr.mxu0 0.0
    %129 = vmatpush1.xpose.msra.mxu0 %v89
    %130 = vmatprep.subr.mxu0 0.0
    %131 = vmatpush1.xpose.msra.mxu0 %v92
    %132 = vmatprep.subr.mxu0 0.0
    %133 = vmatpush1.xpose.msra.mxu0 %v95
    %134 = vmatprep.subr.mxu0 0.0
    %135 = vmatpush1.xpose.msra.mxu0 %v98
    %136 = vmatprep.subr.mxu0 0.0
    %137 = vmatpush1.xpose.msra.mxu0 %v101
    %138 = vmatprep.subr.mxu0 0.0
    %139 = vmatpush1.xpose.msra.mxu0 %v104
    %140 = vmatprep.subr.mxu0 0.0
    %141 = vmatpush1.xpose.msra.mxu0 %v107
    %142 = vmatprep.subr.mxu0 0.0
    %143 = vmatpush1.xpose.msra.mxu0 %v110
    %144 = vmatprep.subr.mxu0 0.0
    %145 = vmatpush1.xpose.msra.mxu0 0.0
    %146 = vmatprep.subr.mxu0 0.0
    %147 = vmatpush1.xpose.msra.mxu0 0.0
    %148 = vmatprep.subr.mxu0 0.0
    %149 = vmatpush1.xpose.msra.mxu0 0.0
    %150 = vmatprep.subr.mxu0 0.0
    %151 = vmatpush1.xpose.msra.mxu0 0.0
    %152 = vmatprep.subr.mxu0 0.0
    %153 = vmatpush1.xpose.msra.mxu0 0.0
    %154 = vmatprep.subr.mxu0 0.0
    %155 = vmatpush1.xpose.msra.mxu0 0.0
    %156 = vmatprep.subr.mxu0 0.0
    %157 = vmatpush1.xpose.msra.mxu0 0.0
    %158 = vmatprep.subr.mxu0 0.0
    %159 = vmatpush1.xpose.msra.mxu0 0.0
    %160 = vmatprep.subr.mxu0 0.0
    %161 = vmatpush1.xpose.msra.mxu0 0.0
    %162 = vmatprep.subr.mxu0 0.0
    %163 = vmatpush1.xpose.msra.mxu0 0.0
    %164 = vmatprep.subr.mxu0 0.0
    %165 = vmatpush1.xpose.msra.mxu0 0.0
    %166 = vmatprep.subr.mxu0 0.0
    %167 = vmatpush1.xpose.msra.mxu0 0.0
    %168 = vmatprep.subr.mxu0 0.0
    %169 = vmatpush1.xpose.msra.mxu0 0.0
    %170 = vmatprep.subr.mxu0 0.0
    %171 = vmatpush1.xpose.msra.mxu0 0.0
    %172 = vmatprep.subr.mxu0 0.0
    %173 = vmatpush1.xpose.msra.mxu0 0.0
    %174 = vmatprep.subr.mxu0 0.0
    %175 = vmatpush1.xpose.msra.mxu0 0.0
    %176 = vmatprep.mubr.f32.mxu0 0.0
    %177 = vmatmul.mubr.f32.gmra.mrb[0].mxu0 %v59
    %v178 = vpop.f32.mrb[0].mxu0
    %v179 = vadd.f32 %v50, %v178
    %v180 = vpop.f32.mrb[0].mxu0
    %181 = vmatprep.mubr.f32.mxu0 0.0
    %182 = vmatmul.mubr.f32.gmra.mrb[0].mxu0 %v62
    %v183 = vpop.f32.mrb[0].mxu0
    %v184 = vadd.f32 %v55, %v183
    %v185 = vpop.f32.mrb[0].mxu0
    %186 = vdwg.mxu0
    %v187 = vxor.u32 %v179, 2147483648
    %v188 = vxor.u32 %v184, 2147483648
    %v189 = vmul.f32 %v187, 1.442695
    %v190 = vpow.pop %v189
    %v191 = vmul.f32 %v188, 1.442695
    %v192 = vpow.pop %v191
    %v193 = vadd.f32 %v190, 1.0
    %v194 = vadd.f32 %v192, 1.0
    %v195 = vrcp.pop %v193
    %v196 = vmul.f32 1.0, %v195
    %v197 = vrcp.pop %v194
    %v198 = vmul.f32 1.0, %v197
    %v199 = vld [vmem:[%s3] sm:$0xff]
    %v200 = vld [vmem:[%s4] sm:$0xff]
    %202 = vset.pattern.permute.xlu0 0
    %203 = vperm.xlu0 %202, %v200
    %v204 = vpop.permute.xlu0 %203
    %vm206 = vcmask 130048
    %v208 = vsel %vm206, %v199, 0
    %210 = vmatprep.subr.mxu0 0.0
    %211 = vmatpush1.msra.mxu0 %v196
    %212 = vmatprep.subr.mxu0 0.0
    %213 = vmatpush1.msra.mxu0 %v198
    %214 = vmatprep.subr.mxu0 0.0
    %215 = vmatpush1.msra.mxu0 0.0
    %216 = vmatprep.subr.mxu0 0.0
    %217 = vmatpush1.msra.mxu0 0.0
    %218 = vmatprep.subr.mxu0 0.0
    %219 = vmatpush1.msra.mxu0 0.0
    %220 = vmatprep.subr.mxu0 0.0
    %221 = vmatpush1.msra.mxu0 0.0
    %222 = vmatprep.subr.mxu0 0.0
    %223 = vmatpush1.msra.mxu0 0.0
    %224 = vmatprep.subr.mxu0 0.0
    %225 = vmatpush1.msra.mxu0 0.0
    %226 = vmatprep.subr.mxu0 0.0
    %227 = vmatpush1.msra.mxu0 0.0
    %228 = vmatprep.subr.mxu0 0.0
    %229 = vmatpush1.msra.mxu0 0.0
    %230 = vmatprep.subr.mxu0 0.0
    %231 = vmatpush1.msra.mxu0 0.0
    %232 = vmatprep.subr.mxu0 0.0
    %233 = vmatpush1.msra.mxu0 0.0
    %234 = vmatprep.subr.mxu0 0.0
    %235 = vmatpush1.msra.mxu0 0.0
    %236 = vmatprep.subr.mxu0 0.0
    %237 = vmatpush1.msra.mxu0 0.0
    %238 = vmatprep.subr.mxu0 0.0
    %239 = vmatpush1.msra.mxu0 0.0
    %240 = vmatprep.subr.mxu0 0.0
    %241 = vmatpush1.msra.mxu0 0.0
    %242 = vmatprep.subr.mxu0 0.0
    %243 = vmatpush1.msra.mxu0 0.0
    %244 = vmatprep.subr.mxu0 0.0
    %245 = vmatpush1.msra.mxu0 0.0
    %246 = vmatprep.subr.mxu0 0.0
    %247 = vmatpush1.msra.mxu0 0.0
    %248 = vmatprep.subr.mxu0 0.0
    %249 = vmatpush1.msra.mxu0 0.0
    %250 = vmatprep.subr.mxu0 0.0
    %251 = vmatpush1.msra.mxu0 0.0
    %252 = vmatprep.subr.mxu0 0.0
    %253 = vmatpush1.msra.mxu0 0.0
    %254 = vmatprep.subr.mxu0 0.0
    %255 = vmatpush1.msra.mxu0 0.0
    %256 = vmatprep.subr.mxu0 0.0
    %257 = vmatpush1.msra.mxu0 0.0
    %258 = vmatprep.subr.mxu0 0.0
    %259 = vmatpush1.msra.mxu0 0.0
    %260 = vmatprep.subr.mxu0 0.0
    %261 = vmatpush1.msra.mxu0 0.0
    %262 = vmatprep.subr.mxu0 0.0
    %263 = vmatpush1.msra.mxu0 0.0
    %264 = vmatprep.subr.mxu0 0.0
    %265 = vmatpush1.msra.mxu0 0.0
    %266 = vmatprep.subr.mxu0 0.0
    %267 = vmatpush1.msra.mxu0 0.0
    %268 = vmatprep.subr.mxu0 0.0
    %269 = vmatpush1.msra.mxu0 0.0
    %270 = vmatprep.subr.mxu0 0.0
    %271 = vmatpush1.msra.mxu0 0.0
    %272 = vmatprep.subr.mxu0 0.0
    %273 = vmatpush1.msra.mxu0 0.0
    %274 = vmatprep.mubr.f32.mxu0 0.0
    %275 = vmatmul.mubr.f32.gmra.mrb[0].mxu0 %v208
    %v276 = vpop.f32.mrb[0].mxu0
    %v277 = vadd.f32 %v204, %v276
    %v278 = vpop.f32.mrb[0].mxu0
    %279 = vdwg.mxu0
    %v280 = vxor.u32 %v277, 2147483648
    %v281 = vmul.f32 %v280, 1.442695
    %v282 = vpow.pop %v281
    %v283 = vadd.f32 %v282, 1.0
    %v284 = vrcp.pop %v283
    %v285 = vmul.f32 1.0, %v284
    %v286 = vld [vmem:[%s5] sm:$0x3]
    %v287 = vld [vmem:[%s6] sm:$0x3]
    %289 = vset.pattern.permute.xlu0 0
    %290 = vperm.xlu0 %289, %v287
    %v291 = vpop.permute.xlu0 %290
    %vm293 = vcmask 64512
    %v295 = vsel %vm293, %v286, 0
    %297 = vmatprep.subr.mxu0 0.0
    %298 = vmatpush1.msra.mxu0 %v285
    %299 = vmatprep.subr.mxu0 0.0
    %300 = vmatpush1.msra.mxu0 0.0
    %301 = vmatprep.subr.mxu0 0.0
    %302 = vmatpush1.msra.mxu0 0.0
    %303 = vmatprep.subr.mxu0 0.0
    %304 = vmatpush1.msra.mxu0 0.0
    %305 = vmatprep.subr.mxu0 0.0
    %306 = vmatpush1.msra.mxu0 0.0
    %307 = vmatprep.subr.mxu0 0.0
    %308 = vmatpush1.msra.mxu0 0.0
    %309 = vmatprep.subr.mxu0 0.0
    %310 = vmatpush1.msra.mxu0 0.0
    %311 = vmatprep.subr.mxu0 0.0
    %312 = vmatpush1.msra.mxu0 0.0
    %313 = vmatprep.subr.mxu0 0.0
    %314 = vmatpush1.msra.mxu0 0.0
    %315 = vmatprep.subr.mxu0 0.0
    %316 = vmatpush1.msra.mxu0 0.0
    %317 = vmatprep.subr.mxu0 0.0
    %318 = vmatpush1.msra.mxu0 0.0
    %319 = vmatprep.subr.mxu0 0.0
    %320 = vmatpush1.msra.mxu0 0.0
    %321 = vmatprep.subr.mxu0 0.0
    %322 = vmatpush1.msra.mxu0 0.0
    %323 = vmatprep.subr.mxu0 0.0
    %324 = vmatpush1.msra.mxu0 0.0
    %325 = vmatprep.subr.mxu0 0.0
    %326 = vmatpush1.msra.mxu0 0.0
    %327 = vmatprep.subr.mxu0 0.0
    %328 = vmatpush1.msra.mxu0 0.0
    %329 = vmatprep.subr.mxu0 0.0
    %330 = vmatpush1.msra.mxu0 0.0
    %331 = vmatprep.subr.mxu0 0.0
    %332 = vmatpush1.msra.mxu0 0.0
    %333 = vmatprep.subr.mxu0 0.0
    %334 = vmatpush1.msra.mxu0 0.0
    %335 = vmatprep.subr.mxu0 0.0
    %336 = vmatpush1.msra.mxu0 0.0
    %337 = vmatprep.subr.mxu0 0.0
    %338 = vmatpush1.msra.mxu0 0.0
    %339 = vmatprep.subr.mxu0 0.0
    %340 = vmatpush1.msra.mxu0 0.0
    %341 = vmatprep.subr.mxu0 0.0
    %342 = vmatpush1.msra.mxu0 0.0
    %343 = vmatprep.subr.mxu0 0.0
    %344 = vmatpush1.msra.mxu0 0.0
    %345 = vmatprep.subr.mxu0 0.0
    %346 = vmatpush1.msra.mxu0 0.0
    %347 = vmatprep.subr.mxu0 0.0
    %348 = vmatpush1.msra.mxu0 0.0
    %349 = vmatprep.subr.mxu0 0.0
    %350 = vmatpush1.msra.mxu0 0.0
    %351 = vmatprep.subr.mxu0 0.0
    %352 = vmatpush1.msra.mxu0 0.0
    %353 = vmatprep.subr.mxu0 0.0
    %354 = vmatpush1.msra.mxu0 0.0
    %355 = vmatprep.subr.mxu0 0.0
    %356 = vmatpush1.msra.mxu0 0.0
    %357 = vmatprep.subr.mxu0 0.0
    %358 = vmatpush1.msra.mxu0 0.0
    %359 = vmatprep.subr.mxu0 0.0
    %360 = vmatpush1.msra.mxu0 0.0
    %361 = vmatprep.mubr.f32.mxu0 0.0
    %362 = vmatmul.mubr.f32.gmra.mrb[0].mxu0 %v295
    %v363 = vpop.f32.mrb[0].mxu0
    %v364 = vadd.f32 %v291, %v363
    %v365 = vpop.f32.mrb[0].mxu0
    %366 = vdwg.mxu0
    %vm367 = vcmask 1041408
    %v368 = vsel %vm367, %v364, -inf
    %v369 = vrot.slane %v368, 4
    %v370 = vmax.f32 %v368, %v369
    %v371 = vrot.slane %v370, 2
    %v372 = vmax.f32 %v370, %v371
    %v373 = vrot.slane %v372, 1
    %v374 = vmax.f32 %v372, %v373
    %v375 = vsub.f32 %v364, %v374
    %v376 = vmul.f32 %v375, 1.442695
    %v377 = vpow.pop %v376
    %v378 = vsel %vm367, %v377, 0.0
    %v379 = vrot.slane %v378, 4
    %v380 = vadd.f32 %v378, %v379
    %v381 = vrot.slane %v380, 2
    %v382 = vadd.f32 %v380, %v381
    %v383 = vrot.slane %v382, 1
    %v384 = vadd.f32 %v382, %v383
    %v385 = vlog2.pop %v384
    %v386 = vmul.f32 %v385, 0.6931472
    %v387 = vsub.f32 %v375, %v386
    %388 = vst [vmem:[#allocation2] sm:$0x3] %v387
    // Predicated region
    $region30: #{tpu_custom_call.1} parent=1 // pred_check
      _
    $region31: #{tpu_custom_call.1} parent=1 // pred_check_branch
      %390 = sbr.rel (0) target = $region33
    $region32: #{tpu_custom_call.1} parent=1 // pred_region
      %s392 = ssub.s32 32, 32
      %393 = vsyncadd [#allocation3], %s392
      %s395 = sshll.u32 [#allocation2], 4
      %s396 = int_to_ptr.vmem [resolvable:$true] %s395
      %398 = dma.vmem_to_hbm [thread:$0]  %s396, 32, %s7, [#allocation3]
    $region33: #{tpu_custom_call.1} parent=1 // pred_fallthru
      _
    // Predicated region
    $region34: #{tpu_custom_call.1} parent=1 // pred_check
      _
    $region35: #{tpu_custom_call.1} parent=1 // pred_check_branch
      %400 = sbr.rel (0) target = $region37
    $region36: #{tpu_custom_call.1} parent=1 // pred_region
      %401 = dma.done [#allocation3], 32
    $region37: #{tpu_custom_call.1} parent=1 // pred_fallthru
      _
    %402 = vsyncpa [#allocation3], 1

</llo_original>
